<compile_context>
chip_gen: v7x
topology: tpu7x:2x2x1
jax: 0.10.0
libtpu: 0.0.40
codegen_flags: <defaults>
</compile_context>

<pallas_src>
import jax
import jax.numpy as jnp
from jax.experimental import pallas as pl
from jax.experimental.pallas import tpu as pltpu


# ---------------------------------------------------------------------------
# Static layout (weight-slab rows, bias-slab columns, output slots)
# ---------------------------------------------------------------------------

def _round_up(n, m):
    return ((n + m - 1) // m) * m


def _make_layout(x_dim, hidden, z1, z2):
    # (name, K rows, logical N, is_mean/log_var head). Heads use two 128-lane
    # slots (mean at lane 0, log_var at lane 128). Rows padded to 16 (bf16).
    blocks = [
        ("Wh",   x_dim,  hidden, False),
        ("Wml1", hidden, z1,     True),
        ("Wh2",  z1,     hidden, False),
        ("Wml2", hidden, z2,     True),
        ("Whd",  z2,     hidden, False),
        ("Wmld", hidden, z1,     True),
        ("Wc1",  z1,     hidden, False),
        ("Wc2",  z1,     hidden, False),
        ("Wout", hidden, x_dim,  False),
    ]
    row_off, r = {}, 0
    for name, k, _, _ in blocks:
        row_off[name] = r
        r += _round_up(k, 16)
    w_rows = _round_up(r, 16)
    w_cols = 256

    bias_blocks = [
        ("bh", hidden, False), ("bml1", z1, True), ("bh2", hidden, False),
        ("bml2", z2, True), ("bhd", hidden, False), ("bmld", z1, True),
        ("bc", hidden, False), ("bout", x_dim, False),
    ]
    bias_off, c = {}, 0
    for name, n, head in bias_blocks:
        bias_off[name] = c
        c += 256 if head else _round_up(n, 128)
    b_cols = c

    out_slot = _round_up(max(x_dim, z1, z2), 128)
    return dict(blocks=blocks, row_off=row_off, w_rows=w_rows, w_cols=w_cols,
                bias_blocks=bias_blocks, bias_off=bias_off, b_cols=b_cols,
                out_slot=out_slot,
                dims=dict(X=x_dim, H=hidden, Z1=z1, Z2=z2))


# ---------------------------------------------------------------------------
# Parameter packing: one bf16 weight slab + one f32 bias slab
# ---------------------------------------------------------------------------

def pack_params(enc, dec, layout):
    f32 = jnp.float32
    L = layout

    def head_w(wm, wlv):
        k, n = wm.shape
        out = jnp.zeros((k, 256), f32)
        out = out.at[:, 0:n].set(wm)
        out = out.at[:, 128:128 + n].set(wlv)
        return out

    mats = {
        "Wh": enc["Wh"], "Wml1": head_w(enc["Wm1"], enc["Wlv1"]),
        "Wh2": enc["Wh2"], "Wml2": head_w(enc["Wm2"], enc["Wlv2"]),
        "Whd": dec["Whd"], "Wmld": head_w(dec["Wmd"], dec["Wlvd"]),
        "Wc1": dec["Wc1"], "Wc2": dec["Wc2"], "Wout": dec["Wout"],
    }
    w_slab = jnp.zeros((L["w_rows"], L["w_cols"]), f32)
    for name, _, _, _ in L["blocks"]:
        m = mats[name]
        r0 = L["row_off"][name]
        w_slab = w_slab.at[r0:r0 + m.shape[0], 0:m.shape[1]].set(m)
    w_slab = w_slab.astype(jnp.bfloat16)   # MXU-native operand dtype

    def head_b(bm, blv):
        out = jnp.zeros((1, 256), f32)
        out = out.at[:, 0:bm.shape[1]].set(bm)
        out = out.at[:, 128:128 + blv.shape[1]].set(blv)
        return out

    bvecs = {
        "bh": enc["bh"], "bml1": head_b(enc["bm1"], enc["blv1"]),
        "bh2": enc["bh2"], "bml2": head_b(enc["bm2"], enc["blv2"]),
        "bhd": dec["bhd"], "bmld": head_b(dec["bmd"], dec["blvd"]),
        "bc": dec["bc"], "bout": dec["bout"],
    }
    b_slab = jnp.zeros((1, L["b_cols"]), f32)
    for name, _, _ in L["bias_blocks"]:
        v = bvecs[name]
        c0 = L["bias_off"][name]
        b_slab = b_slab.at[:, c0:c0 + v.shape[1]].set(v)
    return w_slab, b_slab


# ---------------------------------------------------------------------------
# Fused Pallas kernel: Encoder -> core reparam -> Decoder, one invocation
# ---------------------------------------------------------------------------

def _make_kernel(layout):
    L = layout
    X, H, Z1, Z2 = (L["dims"][k] for k in ("X", "H", "Z1", "Z2"))
    R, Bo, SLOT = L["row_off"], L["bias_off"], L["out_slot"]
    f32, bf16 = jnp.float32, jnp.bfloat16

    def kernel(x_ref, eps_ref, w_ref, b_ref, out_ref):
        def mm(a, name, k, n):
            # bf16 x bf16 -> f32 accumulate on the MXU; static slab slice.
            w = w_ref[R[name]:R[name] + k, 0:n]
            return jnp.dot(a.astype(bf16), w, preferred_element_type=f32)

        def bias(name, n):
            return b_ref[0:1, Bo[name]:Bo[name] + n]

        x = x_ref[...]
        eps = eps_ref[...]                       # (Bb, 384), lane-aligned slots
        eps1 = eps[:, 0:Z1]
        eps2 = eps[:, 128:128 + Z2]
        eps_d = eps[:, 256:256 + Z1]

        # ---- Encoder ----------------------------------------------------
        h = jnp.tanh(mm(x, "Wh", X, H) + bias("bh", H))
        ml1 = mm(h, "Wml1", H, 256) + bias("bml1", 256)
        mean1 = ml1[:, 0:Z1]
        log_var1 = ml1[:, 128:128 + Z1]
        z1 = mean1 + jnp.exp(0.5 * log_var1) * eps1

        # z1 @ Wc1 issued early, off the z2 -> decoder critical path.
        c1 = mm(z1, "Wc1", Z1, H)

        h2 = jnp.tanh(mm(z1, "Wh2", Z1, H) + bias("bh2", H))
        ml2 = mm(h2, "Wml2", H, 256) + bias("bml2", 256)
        mean2 = ml2[:, 0:Z2]
        log_var2 = ml2[:, 128:128 + Z2]

        # ---- Core reparameterization (VAECoreModel2.reparameterization) --
        z2 = mean2 + jnp.exp(0.5 * log_var2) * eps2

        # ---- Decoder ------------------------------------------------------
        hd = jnp.tanh(mm(z2, "Whd", Z2, H) + bias("bhd", H))
        mld = mm(hd, "Wmld", H, 256) + bias("bmld", 256)
        mean_d = mld[:, 0:Z1]
        log_var_d = mld[:, 128:128 + Z1]
        z_d = mean_d + jnp.exp(0.5 * log_var_d) * eps_d

        h3 = jnp.tanh(c1 + mm(z_d, "Wc2", Z1, H) + bias("bc", H))
        theta = jax.nn.sigmoid(mm(h3, "Wout", H, X) + bias("bout", X))

        # ---- lane-aligned per-output 128-lane slots (no concat/rotates) ---
        pieces = (theta, mean1, log_var1, z1, mean2, log_var2, z2,
                  z_d, mean_d, log_var_d)
        for i, p in enumerate(pieces):
            out_ref[:, i * SLOT:i * SLOT + p.shape[1]] = p

    return kernel


# ---------------------------------------------------------------------------
# Wrapper
# ---------------------------------------------------------------------------

def make_vae_forward(layout, block_b=None):
    """Returns forward(x, eps, w_slab, b_slab) -> 10 outputs of the module."""
    L = layout
    X, Z1, Z2 = L["dims"]["X"], L["dims"]["Z1"], L["dims"]["Z2"]
    SLOT = L["out_slot"]
    out_cols = 10 * SLOT
    kernel = _make_kernel(L)

    def forward(x, eps, w_slab, b_slab):
        B = x.shape[0]
        bb = block_b if block_b is not None else min(B, 256)
        assert B % bb == 0 and bb % 8 == 0, "batch block must be a multiple of 8"

        slab = pl.pallas_call(
            kernel,
            out_shape=jax.ShapeDtypeStruct((B, out_cols), jnp.float32),
            grid_spec=pltpu.PrefetchScalarGridSpec(
                num_scalar_prefetch=0,
                grid=(B // bb,),
                in_specs=[
                    pl.BlockSpec((bb, X), lambda i: (i, 0)),
                    pl.BlockSpec((bb, eps.shape[1]), lambda i: (i, 0)),
                    # weights / biases stay resident across batch blocks
                    pl.BlockSpec((L["w_rows"], L["w_cols"]), lambda i: (0, 0)),
                    pl.BlockSpec((1, L["b_cols"]), lambda i: (0, 0)),
                ],
                out_specs=pl.BlockSpec((bb, out_cols), lambda i: (i, 0)),
            ),
            compiler_params=pltpu.CompilerParams(
                dimension_semantics=("parallel",)),
        )(x, eps, w_slab, b_slab)

        widths = [X, Z1, Z1, Z1, Z2, Z2, Z2, Z1, Z1, Z1]
        return tuple(slab[:, i * SLOT:i * SLOT + w] for i, w in enumerate(widths))

    return forward


# ---------------------------------------------------------------------------
# Deterministic parameter construction + pure-JAX reference
# ---------------------------------------------------------------------------

def init_params(key, x_dim, hidden, z1_dim, z2_dim):
    ks = jax.random.split(key, 12)
    n = lambda i, shape: 0.1 * jax.random.normal(ks[i], shape, jnp.float32)
    z = lambda d: jnp.zeros((1, d), jnp.float32)
    enc = {
        "Wh": n(0, (x_dim, hidden)), "bh": z(hidden),
        "Wm1": n(1, (hidden, z1_dim)), "bm1": z(z1_dim),
        "Wlv1": n(2, (hidden, z1_dim)), "blv1": z(z1_dim),
        "Wh2": n(3, (z1_dim, hidden)), "bh2": z(hidden),
        "Wm2": n(4, (hidden, z2_dim)), "bm2": z(z2_dim),
        "Wlv2": n(5, (hidden, z2_dim)), "blv2": z(z2_dim),
    }
    dec = {
        "Whd": n(6, (z2_dim, hidden)), "bhd": z(hidden),
        "Wmd": n(7, (hidden, z1_dim)), "bmd": z(z1_dim),
        "Wlvd": n(8, (hidden, z1_dim)), "blvd": z(z1_dim),
        "Wc1": n(9, (z1_dim, hidden)), "Wc2": n(10, (z1_dim, hidden)),
        "bc": z(hidden),
        "Wout": n(11, (hidden, x_dim)), "bout": z(x_dim),
    }
    return enc, dec


def reference_forward(x, enc, dec, eps, z1_dim, z2_dim):
    """Pure-JAX reference matching the kernel (bf16 matmul inputs, f32 acc)."""
    bf16, f32 = jnp.bfloat16, jnp.float32
    mm = lambda a, w: jnp.dot(a.astype(bf16), w.astype(bf16),
                              preferred_element_type=f32)
    eps1 = eps[:, 0:z1_dim]
    eps2 = eps[:, 128:128 + z2_dim]
    eps_d = eps[:, 256:256 + z1_dim]

    h = jnp.tanh(mm(x, enc["Wh"]) + enc["bh"])
    mean1 = mm(h, enc["Wm1"]) + enc["bm1"]
    log_var1 = mm(h, enc["Wlv1"]) + enc["blv1"]
    z1 = mean1 + jnp.exp(0.5 * log_var1) * eps1
    h2 = jnp.tanh(mm(z1, enc["Wh2"]) + enc["bh2"])
    mean2 = mm(h2, enc["Wm2"]) + enc["bm2"]
    log_var2 = mm(h2, enc["Wlv2"]) + enc["blv2"]
    z2 = mean2 + jnp.exp(0.5 * log_var2) * eps2
    hd = jnp.tanh(mm(z2, dec["Whd"]) + dec["bhd"])
    mean_d = mm(hd, dec["Wmd"]) + dec["bmd"]
    log_var_d = mm(hd, dec["Wlvd"]) + dec["blvd"]
    z_d = mean_d + jnp.exp(0.5 * log_var_d) * eps_d
    h3 = jnp.tanh(mm(z1, dec["Wc1"]) + mm(z_d, dec["Wc2"]) + dec["bc"])
    theta = jax.nn.sigmoid(mm(h3, dec["Wout"]) + dec["bout"])
    return (theta, mean1, log_var1, z1, mean2, log_var2, z2, z_d, mean_d, log_var_d)


# ---------------------------------------------------------------------------
# Main
# ---------------------------------------------------------------------------

if __name__ == "__main__":
    B, X_DIM, HIDDEN, Z1, Z2 = 8, 64, 32, 16, 8

    key = jax.random.PRNGKey(0)
    k_param, k_x, k_eps = jax.random.split(key, 3)

    enc_params, dec_params = init_params(k_param, X_DIM, HIDDEN, Z1, Z2)
    layout = _make_layout(X_DIM, HIDDEN, Z1, Z2)
    w_slab, b_slab = pack_params(enc_params, dec_params, layout)

    x = jax.random.uniform(k_x, (B, X_DIM), jnp.float32)
    # TODO(synk): torch.randn_like per forward -> jax.random.normal here
    # (same N(0,1) distribution, different RNG stream); lane-dense 3x128 slots.
    eps = jax.random.normal(k_eps, (B, 3 * 128), jnp.float32)

    fwd = jax.jit(make_vae_forward(layout))
    outs = jax.block_until_ready(fwd(x, eps, w_slab, b_slab))

    (theta, mean1, log_var1, z1, mean2, log_var2, z2, z_d, mean_d, log_var_d) = outs
    assert theta.shape == (B, X_DIM)
    assert mean1.shape == log_var1.shape == z1.shape == (B, Z1)
    assert mean2.shape == log_var2.shape == z2.shape == (B, Z2)
    assert z_d.shape == mean_d.shape == log_var_d.shape == (B, Z1)
    assert bool(jnp.all(jnp.isfinite(theta)))
    assert bool(jnp.all((theta > 0.0) & (theta < 1.0)))

    # Full forward pass checked against a pure-JAX reference (same eps).
    refs = reference_forward(x, enc_params, dec_params, eps, Z1, Z2)
    for got, ref in zip(outs, refs):
        assert got.shape == ref.shape
        assert bool(jnp.allclose(got, ref, atol=1e-2, rtol=1e-2))

    print("KERNEL_OK")
</pallas_src>

<mosaic_0001>
module attributes {stable_mosaic.version = 11 : i64} {
  func.func @kernel(%arg0: i32, %arg1: memref<8x64xf32, #tpu.memory_space<vmem>>, %arg2: memref<8x384xf32, #tpu.memory_space<vmem>>, %arg3: memref<256x256xbf16, #tpu.memory_space<vmem>>, %arg4: memref<1x1408xf32, #tpu.memory_space<vmem>>, %arg5: memref<8x1280xf32, #tpu.memory_space<vmem>>) attributes {dimension_semantics = [#tpu.dimension_semantics<parallel>], iteration_bounds = array<i64: 1>, scalar_prefetch = 0 : i64, scratch_operands = 0 : i64, tpu.core_type = #tpu.core_type<tc>, window_params = [{transform_indices = @transform_0, window_bounds = array<i64: 8, 64>}, {transform_indices = @transform_1, window_bounds = array<i64: 8, 384>}, {pipeline_mode = #tpu.pipeline_mode<synchronous>, transform_indices = @transform_2, window_bounds = array<i64: 256, 256>}, {pipeline_mode = #tpu.pipeline_mode<synchronous>, transform_indices = @transform_3, window_bounds = array<i64: 1, 1408>}, {transform_indices = @transform_4, window_bounds = array<i64: 8, 1280>}]} {
    %c0 = arith.constant 0 : index
    %c0_0 = arith.constant 0 : index
    %0 = vector.load %arg1[%c0, %c0_0] : memref<8x64xf32, #tpu.memory_space<vmem>>, vector<8x64xf32>
    %c0_1 = arith.constant 0 : index
    %c0_2 = arith.constant 0 : index
    %1 = vector.load %arg2[%c0_1, %c0_2] : memref<8x384xf32, #tpu.memory_space<vmem>>, vector<8x384xf32>
    %2 = vector.extract_strided_slice %1 {offsets = [0, 0], sizes = [8, 16], strides = [1, 1]} : vector<8x384xf32> to vector<8x16xf32>
    %3 = vector.extract_strided_slice %1 {offsets = [0, 128], sizes = [8, 8], strides = [1, 1]} : vector<8x384xf32> to vector<8x8xf32>
    %4 = vector.extract_strided_slice %1 {offsets = [0, 256], sizes = [8, 16], strides = [1, 1]} : vector<8x384xf32> to vector<8x16xf32>
    %c0_3 = arith.constant 0 : index
    %c0_4 = arith.constant 0 : index
    %5 = vector.load %arg3[%c0_3, %c0_4] : memref<256x256xbf16, #tpu.memory_space<vmem>>, vector<64x32xbf16>
    %6 = arith.truncf %0 : vector<8x64xf32> to vector<8x64xbf16>
    %cst = arith.constant dense<0.000000e+00> : vector<8x32xf32>
    %7 = tpu.matmul %6, %5, %cst {dimension_numbers = #tpu.dot_dimension_numbers<[1], [0], [0], [1], [0, 0, 1, 1], [], []>} : vector<8x64xbf16>, vector<64x32xbf16>, vector<8x32xf32> -> vector<8x32xf32>
    %c0_5 = arith.constant 0 : index
    %c0_6 = arith.constant 0 : index
    %8 = vector.load %arg4[%c0_5, %c0_6] : memref<1x1408xf32, #tpu.memory_space<vmem>>, vector<1x32xf32>
    %9 = vector.broadcast %8 : vector<1x32xf32> to vector<8x32xf32>
    %10 = arith.addf %7, %9 : vector<8x32xf32>
    %11 = math.tanh %10 : vector<8x32xf32>
    %c64 = arith.constant 64 : index
    %c0_7 = arith.constant 0 : index
    %12 = vector.load %arg3[%c64, %c0_7] : memref<256x256xbf16, #tpu.memory_space<vmem>>, vector<32x256xbf16>
    %13 = arith.truncf %11 : vector<8x32xf32> to vector<8x32xbf16>
    %cst_8 = arith.constant dense<0.000000e+00> : vector<8x256xf32>
    %14 = tpu.matmul %13, %12, %cst_8 {dimension_numbers = #tpu.dot_dimension_numbers<[1], [0], [0], [1], [0, 0, 1, 1], [], []>} : vector<8x32xbf16>, vector<32x256xbf16>, vector<8x256xf32> -> vector<8x256xf32>
    %c0_9 = arith.constant 0 : index
    %c128 = arith.constant 128 : index
    %15 = vector.load %arg4[%c0_9, %c128] : memref<1x1408xf32, #tpu.memory_space<vmem>>, vector<1x256xf32>
    %16 = vector.broadcast %15 : vector<1x256xf32> to vector<8x256xf32>
    %17 = arith.addf %14, %16 : vector<8x256xf32>
    %18 = vector.extract_strided_slice %17 {offsets = [0, 0], sizes = [8, 16], strides = [1, 1]} : vector<8x256xf32> to vector<8x16xf32>
    %19 = vector.extract_strided_slice %17 {offsets = [0, 128], sizes = [8, 16], strides = [1, 1]} : vector<8x256xf32> to vector<8x16xf32>
    %cst_10 = arith.constant 5.000000e-01 : f32
    %20 = vector.broadcast %cst_10 : f32 to vector<8x16xf32>
    %21 = arith.mulf %20, %19 : vector<8x16xf32>
    %22 = math.exp %21 : vector<8x16xf32>
    %23 = arith.mulf %22, %2 : vector<8x16xf32>
    %24 = arith.addf %18, %23 : vector<8x16xf32>
    %c192 = arith.constant 192 : index
    %c0_11 = arith.constant 0 : index
    %25 = vector.load %arg3[%c192, %c0_11] : memref<256x256xbf16, #tpu.memory_space<vmem>>, vector<16x32xbf16>
    %26 = arith.truncf %24 : vector<8x16xf32> to vector<8x16xbf16>
    %cst_12 = arith.constant dense<0.000000e+00> : vector<8x32xf32>
    %27 = tpu.matmul %26, %25, %cst_12 {dimension_numbers = #tpu.dot_dimension_numbers<[1], [0], [0], [1], [0, 0, 1, 1], [], []>} : vector<8x16xbf16>, vector<16x32xbf16>, vector<8x32xf32> -> vector<8x32xf32>
    %c96 = arith.constant 96 : index
    %c0_13 = arith.constant 0 : index
    %28 = vector.load %arg3[%c96, %c0_13] : memref<256x256xbf16, #tpu.memory_space<vmem>>, vector<16x32xbf16>
    %29 = arith.truncf %24 : vector<8x16xf32> to vector<8x16xbf16>
    %cst_14 = arith.constant dense<0.000000e+00> : vector<8x32xf32>
    %30 = tpu.matmul %29, %28, %cst_14 {dimension_numbers = #tpu.dot_dimension_numbers<[1], [0], [0], [1], [0, 0, 1, 1], [], []>} : vector<8x16xbf16>, vector<16x32xbf16>, vector<8x32xf32> -> vector<8x32xf32>
    %c0_15 = arith.constant 0 : index
    %c384 = arith.constant 384 : index
    %31 = vector.load %arg4[%c0_15, %c384] : memref<1x1408xf32, #tpu.memory_space<vmem>>, vector<1x32xf32>
    %32 = vector.broadcast %31 : vector<1x32xf32> to vector<8x32xf32>
    %33 = arith.addf %30, %32 : vector<8x32xf32>
    %34 = math.tanh %33 : vector<8x32xf32>
    %c112 = arith.constant 112 : index
    %c0_16 = arith.constant 0 : index
    %35 = vector.load %arg3[%c112, %c0_16] : memref<256x256xbf16, #tpu.memory_space<vmem>>, vector<32x256xbf16>
    %36 = arith.truncf %34 : vector<8x32xf32> to vector<8x32xbf16>
    %cst_17 = arith.constant dense<0.000000e+00> : vector<8x256xf32>
    %37 = tpu.matmul %36, %35, %cst_17 {dimension_numbers = #tpu.dot_dimension_numbers<[1], [0], [0], [1], [0, 0, 1, 1], [], []>} : vector<8x32xbf16>, vector<32x256xbf16>, vector<8x256xf32> -> vector<8x256xf32>
    %c0_18 = arith.constant 0 : index
    %c512 = arith.constant 512 : index
    %38 = vector.load %arg4[%c0_18, %c512] : memref<1x1408xf32, #tpu.memory_space<vmem>>, vector<1x256xf32>
    %39 = vector.broadcast %38 : vector<1x256xf32> to vector<8x256xf32>
    %40 = arith.addf %37, %39 : vector<8x256xf32>
    %41 = vector.extract_strided_slice %40 {offsets = [0, 0], sizes = [8, 8], strides = [1, 1]} : vector<8x256xf32> to vector<8x8xf32>
    %42 = vector.extract_strided_slice %40 {offsets = [0, 128], sizes = [8, 8], strides = [1, 1]} : vector<8x256xf32> to vector<8x8xf32>
    %cst_19 = arith.constant 5.000000e-01 : f32
    %43 = vector.broadcast %cst_19 : f32 to vector<8x8xf32>
    %44 = arith.mulf %43, %42 : vector<8x8xf32>
    %45 = math.exp %44 : vector<8x8xf32>
    %46 = arith.mulf %45, %3 : vector<8x8xf32>
    %47 = arith.addf %41, %46 : vector<8x8xf32>
    %c144 = arith.constant 144 : index
    %c0_20 = arith.constant 0 : index
    %48 = vector.load %arg3[%c144, %c0_20] : memref<256x256xbf16, #tpu.memory_space<vmem>>, vector<8x32xbf16>
    %49 = arith.truncf %47 : vector<8x8xf32> to vector<8x8xbf16>
    %cst_21 = arith.constant dense<0.000000e+00> : vector<8x32xf32>
    %50 = tpu.matmul %49, %48, %cst_21 {dimension_numbers = #tpu.dot_dimension_numbers<[1], [0], [0], [1], [0, 0, 1, 1], [], []>} : vector<8x8xbf16>, vector<8x32xbf16>, vector<8x32xf32> -> vector<8x32xf32>
    %c0_22 = arith.constant 0 : index
    %c768 = arith.constant 768 : index
    %51 = vector.load %arg4[%c0_22, %c768] : memref<1x1408xf32, #tpu.memory_space<vmem>>, vector<1x32xf32>
    %52 = vector.broadcast %51 : vector<1x32xf32> to vector<8x32xf32>
    %53 = arith.addf %50, %52 : vector<8x32xf32>
    %54 = math.tanh %53 : vector<8x32xf32>
    %c160 = arith.constant 160 : index
    %c0_23 = arith.constant 0 : index
    %55 = vector.load %arg3[%c160, %c0_23] : memref<256x256xbf16, #tpu.memory_space<vmem>>, vector<32x256xbf16>
    %56 = arith.truncf %54 : vector<8x32xf32> to vector<8x32xbf16>
    %cst_24 = arith.constant dense<0.000000e+00> : vector<8x256xf32>
    %57 = tpu.matmul %56, %55, %cst_24 {dimension_numbers = #tpu.dot_dimension_numbers<[1], [0], [0], [1], [0, 0, 1, 1], [], []>} : vector<8x32xbf16>, vector<32x256xbf16>, vector<8x256xf32> -> vector<8x256xf32>
    %c0_25 = arith.constant 0 : index
    %c896 = arith.constant 896 : index
    %58 = vector.load %arg4[%c0_25, %c896] : memref<1x1408xf32, #tpu.memory_space<vmem>>, vector<1x256xf32>
    %59 = vector.broadcast %58 : vector<1x256xf32> to vector<8x256xf32>
    %60 = arith.addf %57, %59 : vector<8x256xf32>
    %61 = vector.extract_strided_slice %60 {offsets = [0, 0], sizes = [8, 16], strides = [1, 1]} : vector<8x256xf32> to vector<8x16xf32>
    %62 = vector.extract_strided_slice %60 {offsets = [0, 128], sizes = [8, 16], strides = [1, 1]} : vector<8x256xf32> to vector<8x16xf32>
    %cst_26 = arith.constant 5.000000e-01 : f32
    %63 = vector.broadcast %cst_26 : f32 to vector<8x16xf32>
    %64 = arith.mulf %63, %62 : vector<8x16xf32>
    %65 = math.exp %64 : vector<8x16xf32>
    %66 = arith.mulf %65, %4 : vector<8x16xf32>
    %67 = arith.addf %61, %66 : vector<8x16xf32>
    %c208 = arith.constant 208 : index
    %c0_27 = arith.constant 0 : index
    %68 = vector.load %arg3[%c208, %c0_27] : memref<256x256xbf16, #tpu.memory_space<vmem>>, vector<16x32xbf16>
    %69 = arith.truncf %67 : vector<8x16xf32> to vector<8x16xbf16>
    %cst_28 = arith.constant dense<0.000000e+00> : vector<8x32xf32>
    %70 = tpu.matmul %69, %68, %cst_28 {dimension_numbers = #tpu.dot_dimension_numbers<[1], [0], [0], [1], [0, 0, 1, 1], [], []>} : vector<8x16xbf16>, vector<16x32xbf16>, vector<8x32xf32> -> vector<8x32xf32>
    %71 = arith.addf %27, %70 : vector<8x32xf32>
    %c0_29 = arith.constant 0 : index
    %c1152 = arith.constant 1152 : index
    %72 = vector.load %arg4[%c0_29, %c1152] : memref<1x1408xf32, #tpu.memory_space<vmem>>, vector<1x32xf32>
    %73 = vector.broadcast %72 : vector<1x32xf32> to vector<8x32xf32>
    %74 = arith.addf %71, %73 : vector<8x32xf32>
    %75 = math.tanh %74 : vector<8x32xf32>
    %c224 = arith.constant 224 : index
    %c0_30 = arith.constant 0 : index
    %76 = vector.load %arg3[%c224, %c0_30] : memref<256x256xbf16, #tpu.memory_space<vmem>>, vector<32x64xbf16>
    %77 = arith.truncf %75 : vector<8x32xf32> to vector<8x32xbf16>
    %cst_31 = arith.constant dense<0.000000e+00> : vector<8x64xf32>
    %78 = tpu.matmul %77, %76, %cst_31 {dimension_numbers = #tpu.dot_dimension_numbers<[1], [0], [0], [1], [0, 0, 1, 1], [], []>} : vector<8x32xbf16>, vector<32x64xbf16>, vector<8x64xf32> -> vector<8x64xf32>
    %c0_32 = arith.constant 0 : index
    %c1280 = arith.constant 1280 : index
    %79 = vector.load %arg4[%c0_32, %c1280] : memref<1x1408xf32, #tpu.memory_space<vmem>>, vector<1x64xf32>
    %80 = vector.broadcast %79 : vector<1x64xf32> to vector<8x64xf32>
    %81 = arith.addf %78, %80 : vector<8x64xf32>
    %82 = arith.negf %81 : vector<8x64xf32>
    %83 = math.exp %82 : vector<8x64xf32>
    %cst_33 = arith.constant 1.000000e+00 : f32
    %84 = vector.broadcast %cst_33 : f32 to vector<8x64xf32>
    %85 = arith.addf %84, %83 : vector<8x64xf32>
    %86 = arith.divf %84, %85 : vector<8x64xf32>
    %c0_34 = arith.constant 0 : index
    %c0_35 = arith.constant 0 : index
    %87 = vector.load %arg5[%c0_34, %c0_35] : memref<8x1280xf32, #tpu.memory_space<vmem>>, vector<8x64xf32>
    tpu.vector_store %arg5[%c0_34, %c0_35], %86 {strides = array<i32>} : memref<8x1280xf32, #tpu.memory_space<vmem>>, vector<8x64xf32>,
    %c0_36 = arith.constant 0 : index
    %c128_37 = arith.constant 128 : index
    %88 = vector.load %arg5[%c0_36, %c128_37] : memref<8x1280xf32, #tpu.memory_space<vmem>>, vector<8x16xf32>
    tpu.vector_store %arg5[%c0_36, %c128_37], %18 {strides = array<i32>} : memref<8x1280xf32, #tpu.memory_space<vmem>>, vector<8x16xf32>,
    %c0_38 = arith.constant 0 : index
    %c256 = arith.constant 256 : index
    %89 = vector.load %arg5[%c0_38, %c256] : memref<8x1280xf32, #tpu.memory_space<vmem>>, vector<8x16xf32>
    tpu.vector_store %arg5[%c0_38, %c256], %19 {strides = array<i32>} : memref<8x1280xf32, #tpu.memory_space<vmem>>, vector<8x16xf32>,
    %c0_39 = arith.constant 0 : index
    %c384_40 = arith.constant 384 : index
    %90 = vector.load %arg5[%c0_39, %c384_40] : memref<8x1280xf32, #tpu.memory_space<vmem>>, vector<8x16xf32>
    tpu.vector_store %arg5[%c0_39, %c384_40], %24 {strides = array<i32>} : memref<8x1280xf32, #tpu.memory_space<vmem>>, vector<8x16xf32>,
    %c0_41 = arith.constant 0 : index
    %c512_42 = arith.constant 512 : index
    %91 = vector.load %arg5[%c0_41, %c512_42] : memref<8x1280xf32, #tpu.memory_space<vmem>>, vector<8x8xf32>
    tpu.vector_store %arg5[%c0_41, %c512_42], %41 {strides = array<i32>} : memref<8x1280xf32, #tpu.memory_space<vmem>>, vector<8x8xf32>,
    %c0_43 = arith.constant 0 : index
    %c640 = arith.constant 640 : index
    %92 = vector.load %arg5[%c0_43, %c640] : memref<8x1280xf32, #tpu.memory_space<vmem>>, vector<8x8xf32>
    tpu.vector_store %arg5[%c0_43, %c640], %42 {strides = array<i32>} : memref<8x1280xf32, #tpu.memory_space<vmem>>, vector<8x8xf32>,
    %c0_44 = arith.constant 0 : index
    %c768_45 = arith.constant 768 : index
    %93 = vector.load %arg5[%c0_44, %c768_45] : memref<8x1280xf32, #tpu.memory_space<vmem>>, vector<8x8xf32>
    tpu.vector_store %arg5[%c0_44, %c768_45], %47 {strides = array<i32>} : memref<8x1280xf32, #tpu.memory_space<vmem>>, vector<8x8xf32>,
    %c0_46 = arith.constant 0 : index
    %c896_47 = arith.constant 896 : index
    %94 = vector.load %arg5[%c0_46, %c896_47] : memref<8x1280xf32, #tpu.memory_space<vmem>>, vector<8x16xf32>
    tpu.vector_store %arg5[%c0_46, %c896_47], %67 {strides = array<i32>} : memref<8x1280xf32, #tpu.memory_space<vmem>>, vector<8x16xf32>,
    %c0_48 = arith.constant 0 : index
    %c1024 = arith.constant 1024 : index
    %95 = vector.load %arg5[%c0_48, %c1024] : memref<8x1280xf32, #tpu.memory_space<vmem>>, vector<8x16xf32>
    tpu.vector_store %arg5[%c0_48, %c1024], %61 {strides = array<i32>} : memref<8x1280xf32, #tpu.memory_space<vmem>>, vector<8x16xf32>,
    %c0_49 = arith.constant 0 : index
    %c1152_50 = arith.constant 1152 : index
    %96 = vector.load %arg5[%c0_49, %c1152_50] : memref<8x1280xf32, #tpu.memory_space<vmem>>, vector<8x16xf32>
    tpu.vector_store %arg5[%c0_49, %c1152_50], %62 {strides = array<i32>} : memref<8x1280xf32, #tpu.memory_space<vmem>>, vector<8x16xf32>,
    return
  }
  func.func @transform_0(%arg0: i32) -> (i32, i32) {
    %c0_i32 = arith.constant 0 : i32
    %c0_i32_0 = arith.constant 0 : i32
    return %arg0, %c0_i32 : i32, i32
  }
  func.func @transform_1(%arg0: i32) -> (i32, i32) {
    %c0_i32 = arith.constant 0 : i32
    %c0_i32_0 = arith.constant 0 : i32
    return %arg0, %c0_i32 : i32, i32
  }
  func.func @transform_2(%arg0: i32) -> (i32, i32) {
    %c0_i32 = arith.constant 0 : i32
    %c0_i32_0 = arith.constant 0 : i32
    %c0_i32_1 = arith.constant 0 : i32
    return %c0_i32, %c0_i32_0 : i32, i32
  }
  func.func @transform_3(%arg0: i32) -> (i32, i32) {
    %c0_i32 = arith.constant 0 : i32
    %c0_i32_0 = arith.constant 0 : i32
    %c0_i32_1 = arith.constant 0 : i32
    return %c0_i32, %c0_i32_0 : i32, i32
  }
  func.func @transform_4(%arg0: i32) -> (i32, i32) {
    %c0_i32 = arith.constant 0 : i32
    %c0_i32_0 = arith.constant 0 : i32
    return %arg0, %c0_i32 : i32, i32
  }
}

</mosaic_0001>

<llo_original>
// kernel: forward.1
$region0: #{forward.1}
  #allocation0 [shape = 'u32[]', space=smem, size = 0x4, offset = 0x4, fixed_abs, tag = 'smem constant byte address 0x4 - core index']
  #allocation1 [shape = 'u32[144,128]{1,0:T(1,128)}', space=vmem, size = 0x12000, scoped, tag = 'internal scratch']
  %s0 = inlined_call_operand.hbm [shape: f32[8,64], index: 0, kind: input, shape index: {}]
  %s1 = inlined_call_operand.hbm [shape: f32[8,384], index: 1, kind: input, shape index: {}]
  %s2 = inlined_call_operand.hbm [shape: bf16[256,256], index: 2, kind: input, shape index: {}]
  %s3 = inlined_call_operand.vmem [shape: f32[1,1408], index: 3, kind: input, shape index: {}]
  %s4 = inlined_call_operand.vmem [shape: f32[8,1280], index: 4, kind: output, shape index: {}]
  %s5 = sld [smem:[#allocation0]]
  $region38: #{forward.1} parent=0
    _
  %s7 = ssub.s32 1, %s5
  %s8 = scalar_select 0, %s7, %s5
  $region1: #{forward.1} parent=0
    #allocation2 [shape = 'u8[4096]{0}', space=vmem, size = 0x1000, scoped, tag = 'input window, operand 0, single buffered']
    #allocation3 [shape = 's32[1]{0}', space=sflag, size = 0x4, scoped, tag = 'scoped memory for forward.1']
    #allocation4 [shape = 'u8[12288]{0}', space=vmem, size = 0x3000, scoped, tag = 'input window, operand 1, single buffered']
    #allocation5 [shape = 's32[1]{0}', space=sflag, size = 0x4, scoped, tag = 'scoped memory for forward.1']
    #allocation6 [shape = 'u8[131072]{0}', space=vmem, size = 0x20000, scoped, tag = 'input window, operand 2, single buffered']
    %9 = vsyncpa [#allocation3], 0
    %10 = vsyncpa [#allocation5], 0
    // Predicated region
    $region2: #{forward.1} parent=1 // pred_check
      _
    $region3: #{forward.1} parent=1 // pred_check_branch
      %12 = sbr.rel (0) target = $region5
    $region4: #{forward.1} parent=1 // pred_region
      %s14 = ssub.s32 128, 128
      %15 = vsyncadd [#allocation3], %s14
      %s17 = sshll.u32 [#allocation2], 4
      %s18 = int_to_ptr.vmem [resolvable:$true] %s17
      %20 = dma.hbm_to_vmem [thread:$0]  %s0, 128, %s18, [#allocation3]
    $region5: #{forward.1} parent=1 // pred_fallthru
      _
    // Predicated region
    $region6: #{forward.1} parent=1 // pred_check
      _
    $region7: #{forward.1} parent=1 // pred_check_branch
      %22 = sbr.rel (0) target = $region9
    $region8: #{forward.1} parent=1 // pred_region
      %s24 = ssub.s32 384, 384
      %25 = vsyncadd [#allocation5], %s24
      %s27 = sshll.u32 [#allocation4], 4
      %s28 = int_to_ptr.vmem [resolvable:$true] %s27
      %30 = dma.hbm_to_vmem [thread:$0]  %s1, 384, %s28, [#allocation5]
    $region9: #{forward.1} parent=1 // pred_fallthru
      _
    // Predicated region
    $region10: #{forward.1} parent=1 // pred_check
      _
    $region11: #{forward.1} parent=1 // pred_check_branch
      %32 = sbr.rel (0) target = $region13
    $region12: #{forward.1} parent=1 // pred_region
      %s34 = ssub.s32 4096, 4096
      %35 = vsyncadd [#allocation5], %s34
      %s36 = sshll.u32 [#allocation6], 4
      %s37 = int_to_ptr.vmem [resolvable:$true] %s36
      %42 = dma.hbm_to_vmem [thread:$0]  %s2, 4096, %s37, [#allocation5], 128, 128, 8
    $region13: #{forward.1} parent=1 // pred_fallthru
      _
    // Predicated region
    $region14: #{forward.1} parent=1 // pred_check
      _
    $region15: #{forward.1} parent=1 // pred_check_branch
      %44 = sbr.rel (0) target = $region17
    $region16: #{forward.1} parent=1 // pred_region
      _
    $region17: #{forward.1} parent=1 // pred_fallthru
      _
    // Predicated region
    $region18: #{forward.1} parent=1 // pred_check
      _
    $region19: #{forward.1} parent=1 // pred_check_branch
      %46 = sbr.rel (0) target = $region21
    $region20: #{forward.1} parent=1 // pred_region
      %47 = dma.done [#allocation3], 128
    $region21: #{forward.1} parent=1 // pred_fallthru
      _
    // Predicated region
    $region22: #{forward.1} parent=1 // pred_check
      _
    $region23: #{forward.1} parent=1 // pred_check_branch
      %49 = sbr.rel (0) target = $region25
    $region24: #{forward.1} parent=1 // pred_region
      %50 = dma.done [#allocation5], 384
    $region25: #{forward.1} parent=1 // pred_fallthru
      _
    // Predicated region
    $region26: #{forward.1} parent=1 // pred_check
      _
    $region27: #{forward.1} parent=1 // pred_check_branch
      %52 = sbr.rel (0) target = $region29
    $region28: #{forward.1} parent=1 // pred_region
      %53 = dma.done [#allocation5], 4096
    $region29: #{forward.1} parent=1 // pred_fallthru
      _
    %v55 = vld [vmem:[#allocation2] sm:$0xff]
    %v56 = vld [vmem:[#allocation4] sm:$0xff]
    %v57 = vld [vmem:[#allocation4 + $0x8] sm:$0xff]
    %v58 = vld [vmem:[#allocation4 + $0x10] sm:$0xff]
    %v59 = vld [vmem:[#allocation6] sm:$0xf]
    %v60 = vld [vmem:[#allocation6 + $0x8] sm:$0xf]
    %v61 = vld [vmem:[#allocation6 + $0x10] sm:$0xf]
    %v62 = vld [vmem:[#allocation6 + $0x18] sm:$0xf]
    %v63 = vld [vmem:[#allocation6 + $0x20] sm:$0xf]
    %v64 = vld [vmem:[#allocation6 + $0x28] sm:$0xf]
    %v65 = vld [vmem:[#allocation6 + $0x30] sm:$0xf]
    %v66 = vld [vmem:[#allocation6 + $0x38] sm:$0xf]
    %v67 = vpack.c.bf16 %v55, %v55
    %v68 = vld [vmem:[%s3] sm:$0x1]
    %v70 = vlaneseq
    %v71 = vshrl.u32 %v70, 7
    %v72 = vsub.s32 0, %v71
    %v73 = vrot.slane %v68, %v72
    %v83 = vunpack.c.l.b16 %v59
    %v84 = vunpack.c.l.b16 %v60
    %v85 = vunpack.c.l.b16 %v61
    %v86 = vunpack.c.l.b16 %v62
    %v87 = vunpack.c.l.b16 %v63
    %v88 = vunpack.c.l.b16 %v64
    %v89 = vunpack.c.l.b16 %v65
    %v90 = vunpack.c.l.b16 %v66
    %v91 = vpack.c.b16 %v84, %v83
    %v92 = vpack.c.b16 %v86, %v85
    %v93 = vpack.c.b16 %v88, %v87
    %v94 = vpack.c.b16 %v90, %v89
    %vm99 = vcmask 523264
    %v101 = vsel %vm99, %v67, 0
    %103 = vmatprep.subr.bf16.mxu0 0
    %104 = vmatpush1.bf16.msra.mxu0 %v91
    %105 = vmatprep.subr.bf16.mxu0 0
    %106 = vmatpush1.bf16.msra.mxu0 %v92
    %107 = vmatprep.subr.bf16.mxu0 0
    %108 = vmatpush1.bf16.msra.mxu0 %v93
    %109 = vmatprep.subr.bf16.mxu0 0
    %110 = vmatpush1.bf16.msra.mxu0 %v94
    %111 = vmatprep.subr.bf16.mxu0 0
    %112 = vmatpush1.bf16.msra.mxu0 0
    %113 = vmatprep.subr.bf16.mxu0 0
    %114 = vmatpush1.bf16.msra.mxu0 0
    %115 = vmatprep.subr.bf16.mxu0 0
    %116 = vmatpush1.bf16.msra.mxu0 0
    %117 = vmatprep.subr.bf16.mxu0 0
    %118 = vmatpush1.bf16.msra.mxu0 0
    %119 = vmatprep.subr.bf16.mxu0 0
    %120 = vmatpush1.bf16.msra.mxu0 0
    %121 = vmatprep.subr.bf16.mxu0 0
    %122 = vmatpush1.bf16.msra.mxu0 0
    %123 = vmatprep.subr.bf16.mxu0 0
    %124 = vmatpush1.bf16.msra.mxu0 0
    %125 = vmatprep.subr.bf16.mxu0 0
    %126 = vmatpush1.bf16.msra.mxu0 0
    %127 = vmatprep.subr.bf16.mxu0 0
    %128 = vmatpush1.bf16.msra.mxu0 0
    %129 = vmatprep.subr.bf16.mxu0 0
    %130 = vmatpush1.bf16.msra.mxu0 0
    %131 = vmatprep.subr.bf16.mxu0 0
    %132 = vmatpush1.bf16.msra.mxu0 0
    %133 = vmatprep.subr.bf16.mxu0 0
    %134 = vmatpush1.bf16.msra.mxu0 0
    %135 = vmatprep.mubr.bf16.mxu0 0
    %136 = vmatmul.mubr.bf16.gmra.mrb[0].mxu0 %v101
    %v137 = vpop.f32.mrb[0].mxu0
    %v138 = vadd.f32 %v73, %v137
    %v139 = vpop.f32.mrb[0].mxu0
    %v140 = vpop.f32.mrb[0].mxu0
    %v141 = vpop.f32.mrb[0].mxu0
    %142 = vdwg.mxu0
    %v143 = vtanh.pop %v138
    %v144 = vld [vmem:[#allocation6 + $0x40] sm:$0xff]
    %v145 = vld [vmem:[#allocation6 + $0x48] sm:$0xff]
    %v146 = vld [vmem:[#allocation6 + $0x50] sm:$0xff]
    %v147 = vld [vmem:[#allocation6 + $0x58] sm:$0xff]
    %v148 = vpack.c.bf16 %v143, %v143
    %v149 = vld [vmem:[%s3 + $0x1] sm:$0x3]
    %v151 = vlaneseq
    %v152 = vshrl.u32 %v151, 7
    %v153 = vsub.s32 0, %v152
    %v154 = vrot.slane %v149, %v153
    %v155 = vlaneseq
    %v156 = vshrl.u32 %v155, 7
    %v157 = vsub.s32 1, %v156
    %v158 = vrot.slane %v149, %v157
    %v165 = vunpack.c.l.b16 %v144
    %v166 = vunpack.c.h.b16 %v144
    %v167 = vunpack.c.l.b16 %v145
    %v168 = vunpack.c.h.b16 %v145
    %v169 = vunpack.c.l.b16 %v146
    %v170 = vunpack.c.h.b16 %v146
    %v171 = vunpack.c.l.b16 %v147
    %v172 = vunpack.c.h.b16 %v147
    %v173 = vpack.c.b16 %v167, %v165
    %v174 = vpack.c.b16 %v168, %v166
    %v175 = vpack.c.b16 %v171, %v169
    %v176 = vpack.c.b16 %v172, %v170
    %vm181 = vcmask 261120
    %v183 = vsel %vm181, %v148, 0
    %185 = vmatprep.subr.bf16.mxu0 %v174
    %186 = vmatpush1.bf16.msra.mxu0 %v173
    %187 = vmatprep.subr.bf16.mxu0 %v176
    %188 = vmatpush1.bf16.msra.mxu0 %v175
    %189 = vmatprep.subr.bf16.mxu0 0
    %190 = vmatpush1.bf16.msra.mxu0 0
    %191 = vmatprep.subr.bf16.mxu0 0
    %192 = vmatpush1.bf16.msra.mxu0 0
    %193 = vmatprep.subr.bf16.mxu0 0
    %194 = vmatpush1.bf16.msra.mxu0 0
    %195 = vmatprep.subr.bf16.mxu0 0
    %196 = vmatpush1.bf16.msra.mxu0 0
    %197 = vmatprep.subr.bf16.mxu0 0
    %198 = vmatpush1.bf16.msra.mxu0 0
    %199 = vmatprep.subr.bf16.mxu0 0
    %200 = vmatpush1.bf16.msra.mxu0 0
    %201 = vmatprep.subr.bf16.mxu0 0
    %202 = vmatpush1.bf16.msra.mxu0 0
    %203 = vmatprep.subr.bf16.mxu0 0
    %204 = vmatpush1.bf16.msra.mxu0 0
    %205 = vmatprep.subr.bf16.mxu0 0
    %206 = vmatpush1.bf16.msra.mxu0 0
    %207 = vmatprep.subr.bf16.mxu0 0
    %208 = vmatpush1.bf16.msra.mxu0 0
    %209 = vmatprep.subr.bf16.mxu0 0
    %210 = vmatpush1.bf16.msra.mxu0 0
    %211 = vmatprep.subr.bf16.mxu0 0
    %212 = vmatpush1.bf16.msra.mxu0 0
    %213 = vmatprep.subr.bf16.mxu0 0
    %214 = vmatpush1.bf16.msra.mxu0 0
    %215 = vmatprep.subr.bf16.mxu0 0
    %216 = vmatpush1.bf16.msra.mxu0 0
    %217 = vmatprep.mubr.bf16.mxu0 0
    %218 = vmatmul.mubr.bf16.gmra.mrb[0].mxu0 %v183
    %v219 = vpop.f32.mrb[0].mxu0
    %v220 = vadd.f32 %v154, %v219
    %v221 = vpop.f32.mrb[0].mxu0
    %v222 = vadd.f32 %v158, %v221
    %v223 = vpop.f32.mrb[0].mxu0
    %v224 = vpop.f32.mrb[0].mxu0
    %225 = vdwg.mxu0
    %v226 = vmul.f32 %v222, 0.5
    %v227 = vmul.f32 %v226, 1.442695
    %v228 = vpow.pop %v227
    %v229 = vmul.f32 %v228, %v56
    %v230 = vadd.f32 %v220, %v229
    %v231 = vld [vmem:[#allocation6 + $0xc0] sm:$0xf]
    %v232 = vld [vmem:[#allocation6 + $0xc8] sm:$0xf]
    %v233 = vpack.c.bf16 %v230, %v230
    %v234 = vld [vmem:[#allocation6 + $0x60] sm:$0xf]
    %v235 = vld [vmem:[#allocation6 + $0x68] sm:$0xf]
    %v236 = vld [vmem:[%s3 + $0x3] sm:$0x1]
    %v238 = vlaneseq
    %v239 = vshrl.u32 %v238, 7
    %v240 = vsub.s32 0, %v239
    %v241 = vrot.slane %v236, %v240
    %v245 = vunpack.c.l.b16 %v234
    %v246 = vunpack.c.l.b16 %v235
    %v247 = vpack.c.b16 %v246, %v245
    %vm249 = vcmask 130048
    %v251 = vsel %vm249, %v233, 0
    %253 = vmatprep.subr.bf16.mxu0 0
    %254 = vmatpush1.bf16.msra.mxu0 %v247
    %255 = vmatprep.subr.bf16.mxu0 0
    %256 = vmatpush1.bf16.msra.mxu0 0
    %257 = vmatprep.subr.bf16.mxu0 0
    %258 = vmatpush1.bf16.msra.mxu0 0
    %259 = vmatprep.subr.bf16.mxu0 0
    %260 = vmatpush1.bf16.msra.mxu0 0
    %261 = vmatprep.subr.bf16.mxu0 0
    %262 = vmatpush1.bf16.msra.mxu0 0
    %263 = vmatprep.subr.bf16.mxu0 0
    %264 = vmatpush1.bf16.msra.mxu0 0
    %265 = vmatprep.subr.bf16.mxu0 0
    %266 = vmatpush1.bf16.msra.mxu0 0
    %267 = vmatprep.subr.bf16.mxu0 0
    %268 = vmatpush1.bf16.msra.mxu0 0
    %269 = vmatprep.subr.bf16.mxu0 0
    %270 = vmatpush1.bf16.msra.mxu0 0
    %271 = vmatprep.subr.bf16.mxu0 0
    %272 = vmatpush1.bf16.msra.mxu0 0
    %273 = vmatprep.subr.bf16.mxu0 0
    %274 = vmatpush1.bf16.msra.mxu0 0
    %275 = vmatprep.subr.bf16.mxu0 0
    %276 = vmatpush1.bf16.msra.mxu0 0
    %277 = vmatprep.subr.bf16.mxu0 0
    %278 = vmatpush1.bf16.msra.mxu0 0
    %279 = vmatprep.subr.bf16.mxu0 0
    %280 = vmatpush1.bf16.msra.mxu0 0
    %281 = vmatprep.subr.bf16.mxu0 0
    %282 = vmatpush1.bf16.msra.mxu0 0
    %283 = vmatprep.subr.bf16.mxu0 0
    %284 = vmatpush1.bf16.msra.mxu0 0
    %285 = vmatprep.mubr.bf16.mxu0 0
    %286 = vmatmul.mubr.bf16.gmra.mrb[0].mxu0 %v251
    %v287 = vpop.f32.mrb[0].mxu0
    %v288 = vadd.f32 %v241, %v287
    %v289 = vpop.f32.mrb[0].mxu0
    %v290 = vpop.f32.mrb[0].mxu0
    %v291 = vpop.f32.mrb[0].mxu0
    %292 = vdwg.mxu0
    %v293 = vtanh.pop %v288
    %v294 = vld [vmem:[#allocation6 + $0x70] sm:$0xff]
    %v295 = vld [vmem:[#allocation6 + $0x78] sm:$0xff]
    %v296 = vld [vmem:[#allocation6 + $0x80] sm:$0xff]
    %v297 = vld [vmem:[#allocation6 + $0x88] sm:$0xff]
    %v298 = vpack.c.bf16 %v293, %v293
    %v299 = vld [vmem:[%s3 + $0x4] sm:$0x3]
    %v301 = vlaneseq
    %v302 = vshrl.u32 %v301, 7
    %v303 = vsub.s32 0, %v302
    %v304 = vrot.slane %v299, %v303
    %v305 = vlaneseq
    %v306 = vshrl.u32 %v305, 7
    %v307 = vsub.s32 1, %v306
    %v308 = vrot.slane %v299, %v307
    %v315 = vunpack.c.l.b16 %v294
    %v316 = vunpack.c.h.b16 %v294
    %v317 = vunpack.c.l.b16 %v295
    %v318 = vunpack.c.h.b16 %v295
    %v319 = vunpack.c.l.b16 %v296
    %v320 = vunpack.c.h.b16 %v296
    %v321 = vunpack.c.l.b16 %v297
    %v322 = vunpack.c.h.b16 %v297
    %v323 = vpack.c.b16 %v317, %v315
    %v324 = vpack.c.b16 %v318, %v316
    %v325 = vpack.c.b16 %v321, %v319
    %v326 = vpack.c.b16 %v322, %v320
    %v332 = vsel %vm181, %v298, 0
    %334 = vmatprep.subr.bf16.mxu0 %v324
    %335 = vmatpush1.bf16.msra.mxu0 %v323
    %336 = vmatprep.subr.bf16.mxu0 %v326
    %337 = vmatpush1.bf16.msra.mxu0 %v325
    %338 = vmatprep.subr.bf16.mxu0 0
    %339 = vmatpush1.bf16.msra.mxu0 0
    %340 = vmatprep.subr.bf16.mxu0 0
    %341 = vmatpush1.bf16.msra.mxu0 0
    %342 = vmatprep.subr.bf16.mxu0 0
    %343 = vmatpush1.bf16.msra.mxu0 0
    %344 = vmatprep.subr.bf16.mxu0 0
    %345 = vmatpush1.bf16.msra.mxu0 0
    %346 = vmatprep.subr.bf16.mxu0 0
    %347 = vmatpush1.bf16.msra.mxu0 0
    %348 = vmatprep.subr.bf16.mxu0 0
    %349 = vmatpush1.bf16.msra.mxu0 0
    %350 = vmatprep.subr.bf16.mxu0 0
    %351 = vmatpush1.bf16.msra.mxu0 0
    %352 = vmatprep.subr.bf16.mxu0 0
    %353 = vmatpush1.bf16.msra.mxu0 0
    %354 = vmatprep.subr.bf16.mxu0 0
    %355 = vmatpush1.bf16.msra.mxu0 0
    %356 = vmatprep.subr.bf16.mxu0 0
    %357 = vmatpush1.bf16.msra.mxu0 0
    %358 = vmatprep.subr.bf16.mxu0 0
    %359 = vmatpush1.bf16.msra.mxu0 0
    %360 = vmatprep.subr.bf16.mxu0 0
    %361 = vmatpush1.bf16.msra.mxu0 0
    %362 = vmatprep.subr.bf16.mxu0 0
    %363 = vmatpush1.bf16.msra.mxu0 0
    %364 = vmatprep.subr.bf16.mxu0 0
    %365 = vmatpush1.bf16.msra.mxu0 0
    %366 = vmatprep.mubr.bf16.mxu0 0
    %367 = vmatmul.mubr.bf16.gmra.mrb[0].mxu0 %v332
    %v368 = vpop.f32.mrb[0].mxu0
    %v369 = vadd.f32 %v304, %v368
    %v370 = vpop.f32.mrb[0].mxu0
    %v371 = vadd.f32 %v308, %v370
    %v372 = vpop.f32.mrb[0].mxu0
    %v373 = vpop.f32.mrb[0].mxu0
    %374 = vdwg.mxu0
    %v375 = vmul.f32 %v371, 0.5
    %v376 = vmul.f32 %v375, 1.442695
    %v377 = vpow.pop %v376
    %v378 = vmul.f32 %v377, %v57
    %v379 = vadd.f32 %v369, %v378
    %v380 = vld [vmem:[#allocation6 + $0x90] sm:$0xf]
    %v381 = vpack.c.bf16 %v379, %v379
    %v382 = vld [vmem:[%s3 + $0x6] sm:$0x1]
    %v384 = vlaneseq
    %v385 = vshrl.u32 %v384, 7
    %v386 = vsub.s32 0, %v385
    %v387 = vrot.slane %v382, %v386
    %vm389 = vcmask 64512
    %v391 = vsel %vm389, %v381, 0
    %vm393 = vcmask 1043456
    %v395 = vsel %vm393, %v380, 0
    %397 = vmatprep.subr.bf16.mxu0 0
    %398 = vmatpush1.bf16.msra.mxu0 %v395
    %399 = vmatprep.subr.bf16.mxu0 0
    %400 = vmatpush1.bf16.msra.mxu0 0
    %401 = vmatprep.subr.bf16.mxu0 0
    %402 = vmatpush1.bf16.msra.mxu0 0
    %403 = vmatprep.subr.bf16.mxu0 0
    %404 = vmatpush1.bf16.msra.mxu0 0
    %405 = vmatprep.subr.bf16.mxu0 0
    %406 = vmatpush1.bf16.msra.mxu0 0
    %407 = vmatprep.subr.bf16.mxu0 0
    %408 = vmatpush1.bf16.msra.mxu0 0
    %409 = vmatprep.subr.bf16.mxu0 0
    %410 = vmatpush1.bf16.msra.mxu0 0
    %411 = vmatprep.subr.bf16.mxu0 0
    %412 = vmatpush1.bf16.msra.mxu0 0
    %413 = vmatprep.subr.bf16.mxu0 0
    %414 = vmatpush1.bf16.msra.mxu0 0
    %415 = vmatprep.subr.bf16.mxu0 0
    %416 = vmatpush1.bf16.msra.mxu0 0
    %417 = vmatprep.subr.bf16.mxu0 0
    %418 = vmatpush1.bf16.msra.mxu0 0
    %419 = vmatprep.subr.bf16.mxu0 0
    %420 = vmatpush1.bf16.msra.mxu0 0
    %421 = vmatprep.subr.bf16.mxu0 0
    %422 = vmatpush1.bf16.msra.mxu0 0
    %423 = vmatprep.subr.bf16.mxu0 0
    %424 = vmatpush1.bf16.msra.mxu0 0
    %425 = vmatprep.subr.bf16.mxu0 0
    %426 = vmatpush1.bf16.msra.mxu0 0
    %427 = vmatprep.subr.bf16.mxu0 0
    %428 = vmatpush1.bf16.msra.mxu0 0
    %429 = vmatprep.mubr.bf16.mxu0 0
    %430 = vmatmul.mubr.bf16.gmra.mrb[0].mxu0 %v391
    %v431 = vpop.f32.mrb[0].mxu0
    %v432 = vadd.f32 %v387, %v431
    %v433 = vpop.f32.mrb[0].mxu0
    %v434 = vpop.f32.mrb[0].mxu0
    %v435 = vpop.f32.mrb[0].mxu0
    %436 = vdwg.mxu0
    %v437 = vtanh.pop %v432
    %v438 = vld [vmem:[#allocation6 + $0xa0] sm:$0xff]
    %v439 = vld [vmem:[#allocation6 + $0xa8] sm:$0xff]
    %v440 = vld [vmem:[#allocation6 + $0xb0] sm:$0xff]
    %v441 = vld [vmem:[#allocation6 + $0xb8] sm:$0xff]
    %v442 = vpack.c.bf16 %v437, %v437
    %v443 = vld [vmem:[%s3 + $0x7] sm:$0x3]
    %v445 = vlaneseq
    %v446 = vshrl.u32 %v445, 7
    %v447 = vsub.s32 0, %v446
    %v448 = vrot.slane %v443, %v447
    %v449 = vlaneseq
    %v450 = vshrl.u32 %v449, 7
    %v451 = vsub.s32 1, %v450
    %v452 = vrot.slane %v443, %v451
    %v459 = vunpack.c.l.b16 %v438
    %v460 = vunpack.c.h.b16 %v438
    %v461 = vunpack.c.l.b16 %v439
    %v462 = vunpack.c.h.b16 %v439
    %v463 = vunpack.c.l.b16 %v440
    %v464 = vunpack.c.h.b16 %v440
    %v465 = vunpack.c.l.b16 %v441
    %v466 = vunpack.c.h.b16 %v441
    %v467 = vpack.c.b16 %v461, %v459
    %v468 = vpack.c.b16 %v462, %v460
    %v469 = vpack.c.b16 %v465, %v463
    %v470 = vpack.c.b16 %v466, %v464
    %v476 = vsel %vm181, %v442, 0
    %478 = vmatprep.subr.bf16.mxu0 %v468
    %479 = vmatpush1.bf16.msra.mxu0 %v467
    %480 = vmatprep.subr.bf16.mxu0 %v470
    %481 = vmatpush1.bf16.msra.mxu0 %v469
    %482 = vmatprep.subr.bf16.mxu0 0
    %483 = vmatpush1.bf16.msra.mxu0 0
    %484 = vmatprep.subr.bf16.mxu0 0
    %485 = vmatpush1.bf16.msra.mxu0 0
    %486 = vmatprep.subr.bf16.mxu0 0
    %487 = vmatpush1.bf16.msra.mxu0 0
    %488 = vmatprep.subr.bf16.mxu0 0
    %489 = vmatpush1.bf16.msra.mxu0 0
    %490 = vmatprep.subr.bf16.mxu0 0
    %491 = vmatpush1.bf16.msra.mxu0 0
    %492 = vmatprep.subr.bf16.mxu0 0
    %493 = vmatpush1.bf16.msra.mxu0 0
    %494 = vmatprep.subr.bf16.mxu0 0
    %495 = vmatpush1.bf16.msra.mxu0 0
    %496 = vmatprep.subr.bf16.mxu0 0
    %497 = vmatpush1.bf16.msra.mxu0 0
    %498 = vmatprep.subr.bf16.mxu0 0
    %499 = vmatpush1.bf16.msra.mxu0 0
    %500 = vmatprep.subr.bf16.mxu0 0
    %501 = vmatpush1.bf16.msra.mxu0 0
    %502 = vmatprep.subr.bf16.mxu0 0
    %503 = vmatpush1.bf16.msra.mxu0 0
    %504 = vmatprep.subr.bf16.mxu0 0
    %505 = vmatpush1.bf16.msra.mxu0 0
    %506 = vmatprep.subr.bf16.mxu0 0
    %507 = vmatpush1.bf16.msra.mxu0 0
    %508 = vmatprep.subr.bf16.mxu0 0
    %509 = vmatpush1.bf16.msra.mxu0 0
    %510 = vmatprep.mubr.bf16.mxu0 0
    %511 = vmatmul.mubr.bf16.gmra.mrb[0].mxu0 %v476
    %v512 = vpop.f32.mrb[0].mxu0
    %v513 = vadd.f32 %v448, %v512
    %v514 = vpop.f32.mrb[0].mxu0
    %v515 = vadd.f32 %v452, %v514
    %v516 = vpop.f32.mrb[0].mxu0
    %v517 = vpop.f32.mrb[0].mxu0
    %518 = vdwg.mxu0
    %v519 = vmul.f32 %v515, 0.5
    %v520 = vmul.f32 %v519, 1.442695
    %v521 = vpow.pop %v520
    %v522 = vmul.f32 %v521, %v58
    %v523 = vadd.f32 %v513, %v522
    %v524 = vld [vmem:[#allocation6 + $0xd0] sm:$0xf]
    %v525 = vld [vmem:[#allocation6 + $0xd8] sm:$0xf]
    %v526 = vpack.c.bf16 %v523, %v523
    %v529 = vunpack.c.l.b16 %v524
    %v530 = vunpack.c.l.b16 %v525
    %v531 = vpack.c.b16 %v530, %v529
    %v534 = vsel %vm249, %v526, 0
    %536 = vmatprep.subr.bf16.mxu0 0
    %537 = vmatpush1.bf16.msra.mxu0 %v531
    %538 = vmatprep.subr.bf16.mxu0 0
    %539 = vmatpush1.bf16.msra.mxu0 0
    %540 = vmatprep.subr.bf16.mxu0 0
    %541 = vmatpush1.bf16.msra.mxu0 0
    %542 = vmatprep.subr.bf16.mxu0 0
    %543 = vmatpush1.bf16.msra.mxu0 0
    %544 = vmatprep.subr.bf16.mxu0 0
    %545 = vmatpush1.bf16.msra.mxu0 0
    %546 = vmatprep.subr.bf16.mxu0 0
    %547 = vmatpush1.bf16.msra.mxu0 0
    %548 = vmatprep.subr.bf16.mxu0 0
    %549 = vmatpush1.bf16.msra.mxu0 0
    %550 = vmatprep.subr.bf16.mxu0 0
    %551 = vmatpush1.bf16.msra.mxu0 0
    %552 = vmatprep.subr.bf16.mxu0 0
    %553 = vmatpush1.bf16.msra.mxu0 0
    %554 = vmatprep.subr.bf16.mxu0 0
    %555 = vmatpush1.bf16.msra.mxu0 0
    %556 = vmatprep.subr.bf16.mxu0 0
    %557 = vmatpush1.bf16.msra.mxu0 0
    %558 = vmatprep.subr.bf16.mxu0 0
    %559 = vmatpush1.bf16.msra.mxu0 0
    %560 = vmatprep.subr.bf16.mxu0 0
    %561 = vmatpush1.bf16.msra.mxu0 0
    %562 = vmatprep.subr.bf16.mxu0 0
    %563 = vmatpush1.bf16.msra.mxu0 0
    %564 = vmatprep.subr.bf16.mxu0 0
    %565 = vmatpush1.bf16.msra.mxu0 0
    %566 = vmatprep.subr.bf16.mxu0 0
    %567 = vmatpush1.bf16.msra.mxu0 0
    %568 = vmatprep.mubr.bf16.mxu0 0
    %569 = vmatmul.mubr.bf16.gmra.mrb[0].mxu0 %v534
    %v570 = vpop.f32.mrb[0].mxu0
    %v571 = vadd.f32 0.0, %v570
    %v572 = vpop.f32.mrb[0].mxu0
    %v573 = vpop.f32.mrb[0].mxu0
    %v574 = vpop.f32.mrb[0].mxu0
    %575 = vdwg.mxu0
    %v578 = vunpack.c.l.b16 %v231
    %v579 = vunpack.c.l.b16 %v232
    %v580 = vpack.c.b16 %v579, %v578
    %582 = vmatprep.subr.bf16.mxu0 0
    %583 = vmatpush1.bf16.msra.mxu0 %v580
    %584 = vmatprep.subr.bf16.mxu0 0
    %585 = vmatpush1.bf16.msra.mxu0 0
    %586 = vmatprep.subr.bf16.mxu0 0
    %587 = vmatpush1.bf16.msra.mxu0 0
    %588 = vmatprep.subr.bf16.mxu0 0
    %589 = vmatpush1.bf16.msra.mxu0 0
    %590 = vmatprep.subr.bf16.mxu0 0
    %591 = vmatpush1.bf16.msra.mxu0 0
    %592 = vmatprep.subr.bf16.mxu0 0
    %593 = vmatpush1.bf16.msra.mxu0 0
    %594 = vmatprep.subr.bf16.mxu0 0
    %595 = vmatpush1.bf16.msra.mxu0 0
    %596 = vmatprep.subr.bf16.mxu0 0
    %597 = vmatpush1.bf16.msra.mxu0 0
    %598 = vmatprep.subr.bf16.mxu0 0
    %599 = vmatpush1.bf16.msra.mxu0 0
    %600 = vmatprep.subr.bf16.mxu0 0
    %601 = vmatpush1.bf16.msra.mxu0 0
    %602 = vmatprep.subr.bf16.mxu0 0
    %603 = vmatpush1.bf16.msra.mxu0 0
    %604 = vmatprep.subr.bf16.mxu0 0
    %605 = vmatpush1.bf16.msra.mxu0 0
    %606 = vmatprep.subr.bf16.mxu0 0
    %607 = vmatpush1.bf16.msra.mxu0 0
    %608 = vmatprep.subr.bf16.mxu0 0
    %609 = vmatpush1.bf16.msra.mxu0 0
    %610 = vmatprep.subr.bf16.mxu0 0
    %611 = vmatpush1.bf16.msra.mxu0 0
    %612 = vmatprep.subr.bf16.mxu0 0
    %613 = vmatpush1.bf16.msra.mxu0 0
    %614 = vmatprep.mubr.bf16.mxu0 0
    %615 = vmatmul.mubr.bf16.gmra.mrb[0].mxu0 %v251
    %v616 = vpop.f32.mrb[0].mxu0
    %v617 = vadd.f32 %v571, %v616
    %v618 = vpop.f32.mrb[0].mxu0
    %v619 = vpop.f32.mrb[0].mxu0
    %v620 = vpop.f32.mrb[0].mxu0
    %621 = vdwg.mxu0
    %v622 = vld [vmem:[%s3 + $0x9] sm:$0x1]
    %v624 = vlaneseq
    %v625 = vshrl.u32 %v624, 7
    %v626 = vsub.s32 0, %v625
    %v627 = vrot.slane %v622, %v626
    %v629 = vadd.f32 %v617, %v627
    %v630 = vtanh.pop %v629
    %v631 = vld [vmem:[#allocation6 + $0xe0] sm:$0xf]
    %v632 = vld [vmem:[#allocation6 + $0xe8] sm:$0xf]
    %v633 = vld [vmem:[#allocation6 + $0xf0] sm:$0xf]
    %v634 = vld [vmem:[#allocation6 + $0xf8] sm:$0xf]
    %v635 = vpack.c.bf16 %v630, %v630
    %v636 = vld [vmem:[%s3 + $0xa] sm:$0x1]
    %v638 = vlaneseq
    %v639 = vshrl.u32 %v638, 7
    %v640 = vsub.s32 0, %v639
    %v641 = vrot.slane %v636, %v640
    %v647 = vunpack.c.l.b16 %v631
    %v648 = vunpack.c.l.b16 %v632
    %v649 = vunpack.c.l.b16 %v633
    %v650 = vunpack.c.l.b16 %v634
    %v651 = vpack.c.b16 %v648, %v647
    %v652 = vpack.c.b16 %v650, %v649
    %v656 = vsel %vm181, %v635, 0
    %658 = vmatprep.subr.bf16.mxu0 0
    %659 = vmatpush1.bf16.msra.mxu0 %v651
    %660 = vmatprep.subr.bf16.mxu0 0
    %661 = vmatpush1.bf16.msra.mxu0 %v652
    %662 = vmatprep.subr.bf16.mxu0 0
    %663 = vmatpush1.bf16.msra.mxu0 0
    %664 = vmatprep.subr.bf16.mxu0 0
    %665 = vmatpush1.bf16.msra.mxu0 0
    %666 = vmatprep.subr.bf16.mxu0 0
    %667 = vmatpush1.bf16.msra.mxu0 0
    %668 = vmatprep.subr.bf16.mxu0 0
    %669 = vmatpush1.bf16.msra.mxu0 0
    %670 = vmatprep.subr.bf16.mxu0 0
    %671 = vmatpush1.bf16.msra.mxu0 0
    %672 = vmatprep.subr.bf16.mxu0 0
    %673 = vmatpush1.bf16.msra.mxu0 0
    %674 = vmatprep.subr.bf16.mxu0 0
    %675 = vmatpush1.bf16.msra.mxu0 0
    %676 = vmatprep.subr.bf16.mxu0 0
    %677 = vmatpush1.bf16.msra.mxu0 0
    %678 = vmatprep.subr.bf16.mxu0 0
    %679 = vmatpush1.bf16.msra.mxu0 0
    %680 = vmatprep.subr.bf16.mxu0 0
    %681 = vmatpush1.bf16.msra.mxu0 0
    %682 = vmatprep.subr.bf16.mxu0 0
    %683 = vmatpush1.bf16.msra.mxu0 0
    %684 = vmatprep.subr.bf16.mxu0 0
    %685 = vmatpush1.bf16.msra.mxu0 0
    %686 = vmatprep.subr.bf16.mxu0 0
    %687 = vmatpush1.bf16.msra.mxu0 0
    %688 = vmatprep.subr.bf16.mxu0 0
    %689 = vmatpush1.bf16.msra.mxu0 0
    %690 = vmatprep.mubr.bf16.mxu0 0
    %691 = vmatmul.mubr.bf16.gmra.mrb[0].mxu0 %v656
    %v692 = vpop.f32.mrb[0].mxu0
    %v693 = vadd.f32 %v641, %v692
    %v694 = vpop.f32.mrb[0].mxu0
    %v695 = vpop.f32.mrb[0].mxu0
    %v696 = vpop.f32.mrb[0].mxu0
    %697 = vdwg.mxu0
    %v698 = vxor.u32 %v693, 2147483648
    %v699 = vmul.f32 %v698, 1.442695
    %v700 = vpow.pop %v699
    %v701 = vadd.f32 %v700, 1.0
    %v702 = vrcp.pop %v701
    %v703 = vmul.f32 1.0, %v702
    %704 = vst.msk [vmem:[%s4] sm:$0xff] %vm99, %v703
    %705 = vst.msk [vmem:[%s4 + $0x8] sm:$0xff] %vm249, %v220
    %706 = vst.msk [vmem:[%s4 + $0x10] sm:$0xff] %vm249, %v222
    %707 = vst.msk [vmem:[%s4 + $0x18] sm:$0xff] %vm249, %v230
    %708 = vst.msk [vmem:[%s4 + $0x20] sm:$0xff] %vm389, %v369
    %709 = vst.msk [vmem:[%s4 + $0x28] sm:$0xff] %vm389, %v371
    %710 = vst.msk [vmem:[%s4 + $0x30] sm:$0xff] %vm389, %v379
    %711 = vst.msk [vmem:[%s4 + $0x38] sm:$0xff] %vm249, %v523
    %712 = vst.msk [vmem:[%s4 + $0x40] sm:$0xff] %vm249, %v513
    %713 = vst.msk [vmem:[%s4 + $0x48] sm:$0xff] %vm249, %v515
    // Predicated region
    $region30: #{forward.1} parent=1 // pred_check
      _
    $region31: #{forward.1} parent=1 // pred_check_branch
      %715 = sbr.rel (0) target = $region33
    $region32: #{forward.1} parent=1 // pred_region
      _
    $region33: #{forward.1} parent=1 // pred_fallthru
      _
    // Predicated region
    $region34: #{forward.1} parent=1 // pred_check
      _
    $region35: #{forward.1} parent=1 // pred_check_branch
      %717 = sbr.rel (0) target = $region37
    $region36: #{forward.1} parent=1 // pred_region
      _
    $region37: #{forward.1} parent=1 // pred_fallthru
      _
    %718 = vsyncpa [#allocation3], 1
    %719 = vsyncpa [#allocation5], 1

</llo_original>
